<compile_context>
chip_gen: v7x
topology: tpu7x:2x2x1
jax: 0.10.0
libtpu: 0.0.40
codegen_flags: <defaults>
</compile_context>

<pallas_src>
import functools

import jax
import jax.numpy as jnp
from jax.experimental import pallas as pl
from jax.experimental.pallas import tpu as pltpu


# --------------------------------- kernel ----------------------------------

def attention_kernel(xt_ref, x_ref, wqkv_ref, wp_ref, bp_ref, out_ref, acc_ref,
                     *, num_t, head_dim):
    """One (batch, head) grid step of mixed template/search attention.

    xt_ref   : (num_t, C)      bf16, batch-0 template tokens (VMEM resident)
    x_ref    : (1, N, C)       bf16, tokens of batch element b
    wqkv_ref : (H, C, 3*d)     bf16, per-head fused QKV weight (resident)
    wp_ref   : (H, d, C)       bf16, per-head output-projection rows (resident)
    bp_ref   : (1, C)          f32, output-projection bias (resident)
    out_ref  : (1, N, C)       output block for batch element b
    acc_ref  : (N, C)          f32 VMEM accumulator (sum over heads)
    """
    h = pl.program_id(1)
    d = head_dim
    scale = d ** (-0.5)

    w_h = wqkv_ref[h]                                   # (C, 3d) bf16 (dyn idx)
    wp_h = wp_ref[h]                                    # (d, C)  bf16

    # ---- per-head fused QKV for this batch element: one MXU matmul ----
    xb = x_ref[0]                                       # (N, C) bf16
    qkv = jnp.dot(xb, w_h, preferred_element_type=jnp.float32)       # (N, 3d)
    q_s = (qkv[num_t:, :d] * scale).astype(jnp.bfloat16)             # (num_s, d)
    k = qkv[:, d:2 * d].astype(jnp.bfloat16)                         # (N, d)
    v = qkv[:, 2 * d:].astype(jnp.bfloat16)                          # (N, d)

    # ---- template branch: batch-0 template tokens only (tiny, recomputed) ----
    qkv_t = jnp.dot(xt_ref[...], w_h, preferred_element_type=jnp.float32)
    q_t = (qkv_t[:, :d] * scale).astype(jnp.bfloat16)                # (num_t, d)
    k_t = qkv_t[:, d:2 * d].astype(jnp.bfloat16)
    v_t = qkv_t[:, 2 * d:].astype(jnp.bfloat16)

    s_t = jnp.einsum('qd,kd->qk', q_t, k_t,
                     preferred_element_type=jnp.float32)             # (num_t, num_t)
    s_t = s_t - jnp.max(s_t, axis=-1, keepdims=True)
    e_t = jnp.exp(s_t)
    p_t = e_t * pl.reciprocal(jnp.sum(e_t, axis=-1, keepdims=True), approx=True)
    o_t = jnp.dot(p_t.astype(jnp.bfloat16), v_t,
                  preferred_element_type=jnp.float32)                # (num_t, d)

    # ---- search branch: search queries attend over ALL tokens of batch b ----
    s_s = jnp.einsum('qd,kd->qk', q_s, k,
                     preferred_element_type=jnp.float32)             # (num_s, N)
    s_s = s_s - jnp.max(s_s, axis=-1, keepdims=True)
    e_s = jnp.exp(s_s)
    p_s = e_s * pl.reciprocal(jnp.sum(e_s, axis=-1, keepdims=True), approx=True)
    o_s = jnp.dot(p_s.astype(jnp.bfloat16), v,
                  preferred_element_type=jnp.float32)                # (num_s, d)

    # ---- per-head output-projection contribution (lane-dense accumulate) ----
    c_t = jnp.dot(o_t.astype(jnp.bfloat16), wp_h,
                  preferred_element_type=jnp.float32)                # (num_t, C)
    c_s = jnp.dot(o_s.astype(jnp.bfloat16), wp_h,
                  preferred_element_type=jnp.float32)                # (num_s, C)

    @pl.when(h == 0)
    def _():
        acc_ref[...] = jnp.zeros_like(acc_ref)

    acc_ref[:num_t, :] += c_t
    acc_ref[num_t:, :] += c_s

    @pl.when(h == pl.num_programs(1) - 1)
    def _():
        out_ref[0, :, :] = (acc_ref[...] + bp_ref[...]).astype(out_ref.dtype)


# -------------------------------- wrapper -----------------------------------

def attention_forward(x, wqkv, wp, bp, *, num_t, num_s, num_heads):
    B, N, C = x.shape
    assert N == num_t + num_s
    assert C % num_heads == 0
    H = num_heads
    d = C // H

    # bf16 at the pallas_call boundary: halves HBM->VMEM DMA for weights and
    # activations; all accumulation inside the kernel stays f32.
    x_bf = x.astype(jnp.bfloat16)                                  # (B, N, C)
    xt_bf = x_bf[0, :num_t, :]                                     # (num_t, C)
    # wqkv columns are laid out as [q|k|v] x [head h] x [d]; regroup per head.
    wqkv_h = (wqkv.reshape(C, 3, H, d).transpose(2, 0, 1, 3)
              .reshape(H, C, 3 * d).astype(jnp.bfloat16))          # (H, C, 3d)
    wp_h = wp.reshape(H, d, C).astype(jnp.bfloat16)                # (H, d, C)
    bp2 = bp.reshape(1, C).astype(jnp.float32)                     # (1, C)

    kernel = functools.partial(attention_kernel, num_t=num_t, head_dim=d)

    const_map3 = lambda b, h: (0, 0, 0)
    const_map2 = lambda b, h: (0, 0)

    # Advisory cost estimate so XLA schedules neighbors around the custom call.
    flops = (2 * B * N * C * 3 * C                       # fused QKV projection
             + 2 * B * H * (2 * num_t * num_t * d        # template attn (recomputed)
                            + 2 * num_s * N * d)         # search attn
             + 2 * B * N * C * C)                        # output projection
    transcendentals = B * H * (num_t * num_t + num_s * N)
    bytes_accessed = (x_bf.size + xt_bf.size + wqkv_h.size + wp_h.size) * 2 \
        + bp2.size * 4 + B * N * C * 4

    out = pl.pallas_call(
        kernel,
        out_shape=jax.ShapeDtypeStruct((B, N, C), x.dtype),
        grid_spec=pltpu.PrefetchScalarGridSpec(
            num_scalar_prefetch=0,
            grid=(B, H),
            in_specs=[
                pl.BlockSpec((num_t, C), const_map2),              # xt (resident)
                pl.BlockSpec((1, N, C), lambda b, h: (b, 0, 0)),   # x  (per batch)
                pl.BlockSpec((H, C, 3 * d), const_map3),           # wqkv (resident)
                pl.BlockSpec((H, d, C), const_map3),               # wp   (resident)
                pl.BlockSpec((1, C), const_map2),                  # bias (resident)
            ],
            out_specs=pl.BlockSpec((1, N, C), lambda b, h: (b, 0, 0)),
            scratch_shapes=[pltpu.VMEM((N, C), jnp.float32)],
        ),
        compiler_params=pltpu.CompilerParams(
            dimension_semantics=("parallel", "arbitrary"),
            vmem_limit_bytes=32 * 1024 * 1024,
        ),
        cost_estimate=pl.CostEstimate(flops=flops,
                                      transcendentals=transcendentals,
                                      bytes_accessed=bytes_accessed),
    )(xt_bf, x_bf, wqkv_h, wp_h, bp2)
    return out


# ---------------------------- pure-JAX reference -----------------------------

def attention_reference(x, wqkv, wp, bp, *, num_t, num_s, num_heads):
    B, N, C = x.shape
    d = C // num_heads
    scale = d ** (-0.5)

    qkv = (x @ wqkv).reshape(B, N, 3, num_heads, d).transpose(2, 0, 3, 1, 4)
    q, k, v = qkv[0], qkv[1], qkv[2]                       # (B, H, N, d)

    q_t, k_t, v_t = q[:1, :, :num_t], k[:1, :, :num_t], v[:1, :, :num_t]
    a_t = jax.nn.softmax(q_t @ k_t.transpose(0, 1, 3, 2) * scale, axis=-1)
    x_t = (a_t @ v_t).transpose(0, 2, 1, 3).reshape(1, num_t, C)
    x_t = jnp.tile(x_t, (B, 1, 1))

    q_s = q[:, :, num_t:]
    a_s = jax.nn.softmax(q_s @ k.transpose(0, 1, 3, 2) * scale, axis=-1)
    x_s = (a_s @ v).transpose(0, 2, 1, 3).reshape(B, num_s, C)

    return jnp.concatenate([x_t, x_s], axis=1) @ wp + bp


# ----------------------------------- main ------------------------------------

if __name__ == "__main__":
    B, num_t, num_s = 2, 8, 16
    N = num_t + num_s
    C, num_heads = 128, 4          # C=128 keeps every store/matmul lane-dense

    key = jax.random.PRNGKey(0)
    k_x, k_qkv, k_p, k_b = jax.random.split(key, 4)

    x = jax.random.normal(k_x, (B, N, C), dtype=jnp.float32)
    wqkv = 0.02 * jax.random.normal(k_qkv, (C, 3 * C), dtype=jnp.float32)
    wp = 0.02 * jax.random.normal(k_p, (C, C), dtype=jnp.float32)
    bp = 0.02 * jax.random.normal(k_b, (C,), dtype=jnp.float32)

    out = attention_forward(x, wqkv, wp, bp,
                            num_t=num_t, num_s=num_s, num_heads=num_heads)
    out = jax.block_until_ready(out)

    ref = attention_reference(x, wqkv, wp, bp,
                              num_t=num_t, num_s=num_s, num_heads=num_heads)
    ref = jax.block_until_ready(ref)

    assert out.shape == (B, N, C)
    max_err = float(jnp.max(jnp.abs(out - ref)))
    # bf16 MXU operands + approx reciprocal => slightly looser than pure-f32.
    assert jnp.allclose(out, ref, atol=3e-3, rtol=3e-3), max_err

    print("KERNEL_OK")
</pallas_src>

<mosaic_0001>
module attributes {stable_mosaic.version = 11 : i64} {
  func.func @attention_kernel(%arg0: i32, %arg1: i32, %arg2: memref<8x128xbf16, #tpu.memory_space<vmem>>, %arg3: memref<1x24x128xbf16, #tpu.memory_space<vmem>>, %arg4: memref<4x128x96xbf16, #tpu.memory_space<vmem>>, %arg5: memref<4x32x128xbf16, #tpu.memory_space<vmem>>, %arg6: memref<1x128xf32, #tpu.memory_space<vmem>>, %arg7: memref<1x24x128xf32, #tpu.memory_space<vmem>>, %arg8: memref<24x128xf32, #tpu.memory_space<vmem>>) attributes {dimension_semantics = [#tpu.dimension_semantics<parallel>, #tpu.dimension_semantics<arbitrary>], iteration_bounds = array<i64: 2, 4>, scalar_prefetch = 0 : i64, scratch_operands = 1 : i64, tpu.core_type = #tpu.core_type<tc>, window_params = [{pipeline_mode = #tpu.pipeline_mode<synchronous>, transform_indices = @transform_0, window_bounds = array<i64: 8, 128>}, {transform_indices = @transform_1, window_bounds = array<i64: 1, 24, 128>}, {pipeline_mode = #tpu.pipeline_mode<synchronous>, transform_indices = @transform_2, window_bounds = array<i64: 4, 128, 96>}, {pipeline_mode = #tpu.pipeline_mode<synchronous>, transform_indices = @transform_3, window_bounds = array<i64: 4, 32, 128>}, {pipeline_mode = #tpu.pipeline_mode<synchronous>, transform_indices = @transform_4, window_bounds = array<i64: 1, 128>}, {transform_indices = @transform_5, window_bounds = array<i64: 1, 24, 128>}]} {
    %0 = arith.index_cast %arg1 : i32 to index
    %c0 = arith.constant 0 : index
    %c0_0 = arith.constant 0 : index
    %1 = vector.load %arg4[%0, %c0, %c0_0] : memref<4x128x96xbf16, #tpu.memory_space<vmem>>, vector<1x128x96xbf16>
    %2 = vector.shape_cast %1 : vector<1x128x96xbf16> to vector<128x96xbf16>
    %3 = arith.index_cast %arg1 : i32 to index
    %c0_1 = arith.constant 0 : index
    %c0_2 = arith.constant 0 : index
    %4 = vector.load %arg5[%3, %c0_1, %c0_2] : memref<4x32x128xbf16, #tpu.memory_space<vmem>>, vector<1x32x128xbf16>
    %5 = vector.shape_cast %4 : vector<1x32x128xbf16> to vector<32x128xbf16>
    %c0_3 = arith.constant 0 : index
    %c0_4 = arith.constant 0 : index
    %c0_5 = arith.constant 0 : index
    %6 = vector.load %arg3[%c0_3, %c0_4, %c0_5] : memref<1x24x128xbf16, #tpu.memory_space<vmem>>, vector<1x24x128xbf16>
    %7 = vector.shape_cast %6 : vector<1x24x128xbf16> to vector<24x128xbf16>
    %cst = arith.constant dense<0.000000e+00> : vector<24x96xf32>
    %8 = tpu.matmul %7, %2, %cst {dimension_numbers = #tpu.dot_dimension_numbers<[1], [0], [0], [1], [0, 0, 1, 1], [], []>} : vector<24x128xbf16>, vector<128x96xbf16>, vector<24x96xf32> -> vector<24x96xf32>
    %9 = vector.extract_strided_slice %8 {offsets = [8, 0], sizes = [16, 32], strides = [1, 1]} : vector<24x96xf32> to vector<16x32xf32>
    %cst_6 = arith.constant 0.176776692 : f32
    %10 = vector.broadcast %cst_6 : f32 to vector<16x32xf32>
    %11 = arith.mulf %9, %10 : vector<16x32xf32>
    %12 = arith.truncf %11 : vector<16x32xf32> to vector<16x32xbf16>
    %13 = vector.extract_strided_slice %8 {offsets = [0, 32], sizes = [24, 32], strides = [1, 1]} : vector<24x96xf32> to vector<24x32xf32>
    %14 = arith.truncf %13 : vector<24x32xf32> to vector<24x32xbf16>
    %15 = vector.extract_strided_slice %8 {offsets = [0, 64], sizes = [24, 32], strides = [1, 1]} : vector<24x96xf32> to vector<24x32xf32>
    %16 = arith.truncf %15 : vector<24x32xf32> to vector<24x32xbf16>
    %c0_7 = arith.constant 0 : index
    %c0_8 = arith.constant 0 : index
    %17 = vector.load %arg2[%c0_7, %c0_8] : memref<8x128xbf16, #tpu.memory_space<vmem>>, vector<8x128xbf16>
    %cst_9 = arith.constant dense<0.000000e+00> : vector<8x96xf32>
    %18 = tpu.matmul %17, %2, %cst_9 {dimension_numbers = #tpu.dot_dimension_numbers<[1], [0], [0], [1], [0, 0, 1, 1], [], []>} : vector<8x128xbf16>, vector<128x96xbf16>, vector<8x96xf32> -> vector<8x96xf32>
    %19 = vector.extract_strided_slice %18 {offsets = [0, 0], sizes = [8, 32], strides = [1, 1]} : vector<8x96xf32> to vector<8x32xf32>
    %cst_10 = arith.constant 0.176776692 : f32
    %20 = vector.broadcast %cst_10 : f32 to vector<8x32xf32>
    %21 = arith.mulf %19, %20 : vector<8x32xf32>
    %22 = arith.truncf %21 : vector<8x32xf32> to vector<8x32xbf16>
    %23 = vector.extract_strided_slice %18 {offsets = [0, 32], sizes = [8, 32], strides = [1, 1]} : vector<8x96xf32> to vector<8x32xf32>
    %24 = arith.truncf %23 : vector<8x32xf32> to vector<8x32xbf16>
    %25 = vector.extract_strided_slice %18 {offsets = [0, 64], sizes = [8, 32], strides = [1, 1]} : vector<8x96xf32> to vector<8x32xf32>
    %26 = arith.truncf %25 : vector<8x32xf32> to vector<8x32xbf16>
    "tpu.trace_start"() <{level = 10 : i32, message = "qd,kd->qk"}> : () -> ()
    %cst_11 = arith.constant dense<0.000000e+00> : vector<8x8xf32>
    %27 = tpu.matmul %22, %24, %cst_11 {dimension_numbers = #tpu.dot_dimension_numbers<[1], [1], [0], [0], [0, 0, 1, 0], [], []>} : vector<8x32xbf16>, vector<8x32xbf16>, vector<8x8xf32> -> vector<8x8xf32>
    "tpu.trace_stop"() : () -> ()
    %cst_12 = arith.constant dense<0xFF800000> : vector<8xf32>
    %28 = vector.multi_reduction <maximumf>, %27, %cst_12 [1] : vector<8x8xf32> to vector<8xf32>
    %29 = vector.shape_cast %28 : vector<8xf32> to vector<8x1xf32>
    %30 = vector.broadcast %29 : vector<8x1xf32> to vector<8x8xf32>
    %31 = arith.subf %27, %30 : vector<8x8xf32>
    %32 = math.exp %31 : vector<8x8xf32>
    %cst_13 = arith.constant dense<0.000000e+00> : vector<8xf32>
    %33 = vector.multi_reduction <add>, %32, %cst_13 [1] : vector<8x8xf32> to vector<8xf32>
    %34 = vector.shape_cast %33 : vector<8xf32> to vector<8x1xf32>
    %35 = tpu.reciprocal %34 {approx = true} : vector<8x1xf32> -> vector<8x1xf32>
    %36 = vector.broadcast %35 : vector<8x1xf32> to vector<8x8xf32>
    %37 = arith.mulf %32, %36 : vector<8x8xf32>
    %38 = arith.truncf %37 : vector<8x8xf32> to vector<8x8xbf16>
    %cst_14 = arith.constant dense<0.000000e+00> : vector<8x32xf32>
    %39 = tpu.matmul %38, %26, %cst_14 {dimension_numbers = #tpu.dot_dimension_numbers<[1], [0], [0], [1], [0, 0, 1, 1], [], []>} : vector<8x8xbf16>, vector<8x32xbf16>, vector<8x32xf32> -> vector<8x32xf32>
    "tpu.trace_start"() <{level = 10 : i32, message = "qd,kd->qk"}> : () -> ()
    %cst_15 = arith.constant dense<0.000000e+00> : vector<16x24xf32>
    %40 = tpu.matmul %12, %14, %cst_15 {dimension_numbers = #tpu.dot_dimension_numbers<[1], [1], [0], [0], [0, 0, 1, 0], [], []>} : vector<16x32xbf16>, vector<24x32xbf16>, vector<16x24xf32> -> vector<16x24xf32>
    "tpu.trace_stop"() : () -> ()
    %cst_16 = arith.constant dense<0xFF800000> : vector<16xf32>
    %41 = vector.multi_reduction <maximumf>, %40, %cst_16 [1] : vector<16x24xf32> to vector<16xf32>
    %42 = vector.shape_cast %41 : vector<16xf32> to vector<16x1xf32>
    %43 = vector.broadcast %42 : vector<16x1xf32> to vector<16x24xf32>
    %44 = arith.subf %40, %43 : vector<16x24xf32>
    %45 = math.exp %44 : vector<16x24xf32>
    %cst_17 = arith.constant dense<0.000000e+00> : vector<16xf32>
    %46 = vector.multi_reduction <add>, %45, %cst_17 [1] : vector<16x24xf32> to vector<16xf32>
    %47 = vector.shape_cast %46 : vector<16xf32> to vector<16x1xf32>
    %48 = tpu.reciprocal %47 {approx = true} : vector<16x1xf32> -> vector<16x1xf32>
    %49 = vector.broadcast %48 : vector<16x1xf32> to vector<16x24xf32>
    %50 = arith.mulf %45, %49 : vector<16x24xf32>
    %51 = arith.truncf %50 : vector<16x24xf32> to vector<16x24xbf16>
    %cst_18 = arith.constant dense<0.000000e+00> : vector<16x32xf32>
    %52 = tpu.matmul %51, %16, %cst_18 {dimension_numbers = #tpu.dot_dimension_numbers<[1], [0], [0], [1], [0, 0, 1, 1], [], []>} : vector<16x24xbf16>, vector<24x32xbf16>, vector<16x32xf32> -> vector<16x32xf32>
    %53 = arith.truncf %39 : vector<8x32xf32> to vector<8x32xbf16>
    %cst_19 = arith.constant dense<0.000000e+00> : vector<8x128xf32>
    %54 = tpu.matmul %53, %5, %cst_19 {dimension_numbers = #tpu.dot_dimension_numbers<[1], [0], [0], [1], [0, 0, 1, 1], [], []>} : vector<8x32xbf16>, vector<32x128xbf16>, vector<8x128xf32> -> vector<8x128xf32>
    %55 = arith.truncf %52 : vector<16x32xf32> to vector<16x32xbf16>
    %cst_20 = arith.constant dense<0.000000e+00> : vector<16x128xf32>
    %56 = tpu.matmul %55, %5, %cst_20 {dimension_numbers = #tpu.dot_dimension_numbers<[1], [0], [0], [1], [0, 0, 1, 1], [], []>} : vector<16x32xbf16>, vector<32x128xbf16>, vector<16x128xf32> -> vector<16x128xf32>
    %c0_i32 = arith.constant 0 : i32
    %57 = arith.cmpi eq, %arg1, %c0_i32 : i32
    %58 = arith.extui %57 : i1 to i32
    %c0_i32_21 = arith.constant 0 : i32
    %59 = arith.cmpi ne, %58, %c0_i32_21 : i32
    scf.if %59 {
      %cst_30 = arith.constant 0.000000e+00 : f32
      %69 = vector.broadcast %cst_30 : f32 to vector<24x128xf32>
      %c0_31 = arith.constant 0 : index
      %c0_32 = arith.constant 0 : index
      %70 = vector.load %arg8[%c0_31, %c0_32] : memref<24x128xf32, #tpu.memory_space<vmem>>, vector<24x128xf32>
      tpu.vector_store %arg8[%c0_31, %c0_32], %69 {strides = array<i32>} : memref<24x128xf32, #tpu.memory_space<vmem>>, vector<24x128xf32>,
    } else {
    }
    %c0_22 = arith.constant 0 : index
    %c0_23 = arith.constant 0 : index
    %60 = vector.load %arg8[%c0_22, %c0_23] : memref<24x128xf32, #tpu.memory_space<vmem>>, vector<8x128xf32>
    %61 = arith.addf %60, %54 : vector<8x128xf32>
    %c0_24 = arith.constant 0 : index
    %c0_25 = arith.constant 0 : index
    %62 = vector.load %arg8[%c0_24, %c0_25] : memref<24x128xf32, #tpu.memory_space<vmem>>, vector<8x128xf32>
    tpu.vector_store %arg8[%c0_24, %c0_25], %61 {strides = array<i32>} : memref<24x128xf32, #tpu.memory_space<vmem>>, vector<8x128xf32>,
    %c8 = arith.constant 8 : index
    %c0_26 = arith.constant 0 : index
    %63 = vector.load %arg8[%c8, %c0_26] : memref<24x128xf32, #tpu.memory_space<vmem>>, vector<16x128xf32>
    %64 = arith.addf %63, %56 : vector<16x128xf32>
    %c8_27 = arith.constant 8 : index
    %c0_28 = arith.constant 0 : index
    %65 = vector.load %arg8[%c8_27, %c0_28] : memref<24x128xf32, #tpu.memory_space<vmem>>, vector<16x128xf32>
    tpu.vector_store %arg8[%c8_27, %c0_28], %64 {strides = array<i32>} : memref<24x128xf32, #tpu.memory_space<vmem>>, vector<16x128xf32>,
    %c3_i32 = arith.constant 3 : i32
    %66 = arith.cmpi eq, %arg1, %c3_i32 : i32
    %67 = arith.extui %66 : i1 to i32
    %c0_i32_29 = arith.constant 0 : i32
    %68 = arith.cmpi ne, %67, %c0_i32_29 : i32
    scf.if %68 {
      %c0_30 = arith.constant 0 : index
      %c0_31 = arith.constant 0 : index
      %69 = vector.load %arg8[%c0_30, %c0_31] : memref<24x128xf32, #tpu.memory_space<vmem>>, vector<24x128xf32>
      %c0_32 = arith.constant 0 : index
      %c0_33 = arith.constant 0 : index
      %70 = vector.load %arg6[%c0_32, %c0_33] : memref<1x128xf32, #tpu.memory_space<vmem>>, vector<1x128xf32>
      %71 = vector.broadcast %70 : vector<1x128xf32> to vector<24x128xf32>
      %72 = arith.addf %69, %71 : vector<24x128xf32>
      %c0_34 = arith.constant 0 : index
      %c0_35 = arith.constant 0 : index
      %c0_36 = arith.constant 0 : index
      %73 = vector.load %arg7[%c0_34, %c0_35, %c0_36] : memref<1x24x128xf32, #tpu.memory_space<vmem>>, vector<1x24x128xf32>
      %74 = vector.shape_cast %73 : vector<1x24x128xf32> to vector<24x128xf32>
      %75 = vector.shape_cast %72 : vector<24x128xf32> to vector<1x24x128xf32>
      tpu.vector_store %arg7[%c0_34, %c0_35, %c0_36], %75 {strides = array<i32>} : memref<1x24x128xf32, #tpu.memory_space<vmem>>, vector<1x24x128xf32>,
    } else {
    }
    return
  }
  func.func @transform_0(%arg0: i32, %arg1: i32) -> (i32, i32) {
    %c0_i32 = arith.constant 0 : i32
    %c0_i32_0 = arith.constant 0 : i32
    %c0_i32_1 = arith.constant 0 : i32
    return %c0_i32, %c0_i32_0 : i32, i32
  }
  func.func @transform_1(%arg0: i32, %arg1: i32) -> (i32, i32, i32) {
    %c0_i32 = arith.constant 0 : i32
    %c0_i32_0 = arith.constant 0 : i32
    %c0_i32_1 = arith.constant 0 : i32
    return %arg0, %c0_i32, %c0_i32_0 : i32, i32, i32
  }
  func.func @transform_2(%arg0: i32, %arg1: i32) -> (i32, i32, i32) {
    %c0_i32 = arith.constant 0 : i32
    %c0_i32_0 = arith.constant 0 : i32
    %c0_i32_1 = arith.constant 0 : i32
    %c0_i32_2 = arith.constant 0 : i32
    return %c0_i32, %c0_i32_0, %c0_i32_1 : i32, i32, i32
  }
  func.func @transform_3(%arg0: i32, %arg1: i32) -> (i32, i32, i32) {
    %c0_i32 = arith.constant 0 : i32
    %c0_i32_0 = arith.constant 0 : i32
    %c0_i32_1 = arith.constant 0 : i32
    %c0_i32_2 = arith.constant 0 : i32
    return %c0_i32, %c0_i32_0, %c0_i32_1 : i32, i32, i32
  }
  func.func @transform_4(%arg0: i32, %arg1: i32) -> (i32, i32) {
    %c0_i32 = arith.constant 0 : i32
    %c0_i32_0 = arith.constant 0 : i32
    %c0_i32_1 = arith.constant 0 : i32
    return %c0_i32, %c0_i32_0 : i32, i32
  }
  func.func @transform_5(%arg0: i32, %arg1: i32) -> (i32, i32, i32) {
    %c0_i32 = arith.constant 0 : i32
    %c0_i32_0 = arith.constant 0 : i32
    %c0_i32_1 = arith.constant 0 : i32
    return %arg0, %c0_i32, %c0_i32_0 : i32, i32, i32
  }
}

</mosaic_0001>

<llo_original>
// kernel: tpu_custom_call.1
$region0: #{tpu_custom_call.1}
  #allocation0 [shape = 'u32[]', space=smem, size = 0x4, offset = 0x4, fixed_abs, tag = 'smem constant byte address 0x4 - core index']
  #allocation1 [shape = 'u32[144,128]{1,0:T(1,128)}', space=vmem, size = 0x12000, scoped, tag = 'internal scratch']
  #allocation2 [shape = 'f32[24,128]{1,0:T(8,128)}', space=vmem, size = 0x3000, scoped, tag = 'scratch operand']
  %s0 = inlined_call_operand.vmem [shape: bf16[8,128], index: 0, kind: input, shape index: {}]
  %s1 = inlined_call_operand.vmem [shape: bf16[2,24,128], index: 1, kind: input, shape index: {}]
  %s2 = inlined_call_operand.vmem [shape: bf16[4,128,96], index: 2, kind: input, shape index: {}]
  %s3 = inlined_call_operand.vmem [shape: bf16[4,32,128], index: 3, kind: input, shape index: {}]
  %s4 = inlined_call_operand.vmem [shape: f32[1,128], index: 4, kind: input, shape index: {}]
  %s5 = inlined_call_operand.hbm [shape: f32[2,24,128], index: 5, kind: output, shape index: {}]
  %s6 = sld [smem:[#allocation0]]
  $region61: #{tpu_custom_call.1} parent=0
    _
  %s8 = ssub.s32 1, %s6
  %s9 = scalar_select 0, %s8, %s6
  $region1: #{tpu_custom_call.1} parent=0
    #allocation3 [shape = 'u8[24576]{0}', space=vmem, size = 0x6000, scoped, tag = 'output window, operand 0']
    #allocation4 [shape = 's32[2]{0}', space=sflag, size = 0x8, scoped, tag = 'scoped memory for tpu_custom_call.1']
    %10 = vsyncpa [#allocation4], 0
    %s11 = scalar_lea.sflag [#allocation4], 1
    %12 = vsyncpa %s11, 0
    loop: start=0, step=1, limit=10
    $region2: #{tpu_custom_call.1} parent=1 // loop_pre_header
      _
    $region3: #{tpu_custom_call.1} parent=1 // loop_header
      %s14 = sphi 0, %s18
      %p15 = scmp.ge.s32.totalorder %s14, 10
      %s21 = sphi 0, %s33
      %s22 = sphi 0, %s29
      %s23 = sphi 0, %s21
      %s24 = sphi 0, %s22
      %s25 = sphi 0, %s23
      %s26 = sphi 0, %s24
      %s34 = sphi 0, %s34
      %s36 = sphi 0, %s34
      %s37 = sphi 0, %s36
      %s51 = sphi 0, %s37
      %s57 = sphi 0, %s59
      %s60 = sphi 0, %s57
      %s61 = sphi 0, %s60
      %s77 = sphi 0, %s61
      %s81 = sphi 0, %s81
      %s83 = sphi 0, %s81
      %s84 = sphi 0, %s83
      %s98 = sphi 0, %s84
      %s102 = sphi 0, %s102
      %s104 = sphi 0, %s102
      %s105 = sphi 0, %s104
      %s119 = sphi 0, %s105
      %s123 = sphi 0, %s123
      %s125 = sphi 0, %s123
      %s126 = sphi 0, %s125
      %s140 = sphi 0, %s126
      %s146 = sphi 0, %s148
      %s149 = sphi 0, %s146
      %s150 = sphi 0, %s149
      %s166 = sphi 0, %s150
    $region4: #{tpu_custom_call.1} parent=1 // loop_header_branch
      %17 = sbr.rel (%p15) target = $region8
    $region5: #{tpu_custom_call.1} parent=1 // loop_body
      %s19 = ssub.s32 %s14, 1
      %s20 = ssub.s32 %s14, 2
      %s27 = sadd.s32 1, %s22
      %p28 = scmp.ge.s32.totalorder %s27, 4
      %s29 = scalar_select %p28, 0, %s27
      %s30 = sadd.s32 1, %s21
      %s31 = scalar_select %p28, %s30, %s21
      %p32 = scmp.ge.s32.totalorder %s31, 2
      %s33 = scalar_select %p32, 0, %s31
      %s35 = sadd.s32 %s34, 1
      %p38 = scmp.eq.s32.totalorder %s14, 7
      %p39 = scmp.ne.s32.totalorder %s34, %s36
      %p40 = scmp.eq.s32.totalorder %s14, 0
      %p41 = por %p39, %p40
      %p42 = scmp.ne.s32.totalorder %s34, %s36
      %p43 = scmp.eq.s32.totalorder %s19, 7
      %p44 = por %p42, %p43
      %p45 = scmp.ne.s32.totalorder %s36, %s37
      %p46 = scmp.eq.s32.totalorder %s19, 0
      %p47 = por %p45, %p46
      %p48 = scmp.ne.s32.totalorder %s36, %s37
      %p49 = scmp.eq.s32.totalorder %s20, 7
      %p50 = por %p48, %p49
      %p52 = scmp.ne.s32.totalorder %s37, %s51
      %p53 = scmp.eq.s32.totalorder %s20, 0
      %p54 = por %p52, %p53
      %s55 = ssub.s32 %s21, %s33
      %p56 = scmp.eq.s32.totalorder %s55, 0
      %s58 = sadd.s32 %s57, 1
      %s59 = scalar_select %p56, %s57, %s58
      %p62 = pneg %p56
      %p63 = scmp.eq.s32.totalorder %s14, 7
      %p64 = por %p62, %p63
      %p65 = scmp.ne.s32.totalorder %s57, %s60
      %p66 = scmp.eq.s32.totalorder %s14, 0
      %p67 = por %p65, %p66
      %p68 = scmp.ne.s32.totalorder %s57, %s60
      %p69 = scmp.eq.s32.totalorder %s19, 7
      %p70 = por %p68, %p69
      %p71 = scmp.ne.s32.totalorder %s60, %s61
      %p72 = scmp.eq.s32.totalorder %s19, 0
      %p73 = por %p71, %p72
      %p74 = scmp.ne.s32.totalorder %s60, %s61
      %p75 = scmp.eq.s32.totalorder %s20, 7
      %p76 = por %p74, %p75
      %p78 = scmp.ne.s32.totalorder %s61, %s77
      %p79 = scmp.eq.s32.totalorder %s20, 0
      %p80 = por %p78, %p79
      %s82 = sadd.s32 %s81, 1
      %p85 = scmp.eq.s32.totalorder %s14, 7
      %p86 = scmp.ne.s32.totalorder %s81, %s83
      %p87 = scmp.eq.s32.totalorder %s14, 0
      %p88 = por %p86, %p87
      %p89 = scmp.ne.s32.totalorder %s81, %s83
      %p90 = scmp.eq.s32.totalorder %s19, 7
      %p91 = por %p89, %p90
      %p92 = scmp.ne.s32.totalorder %s83, %s84
      %p93 = scmp.eq.s32.totalorder %s19, 0
      %p94 = por %p92, %p93
      %p95 = scmp.ne.s32.totalorder %s83, %s84
      %p96 = scmp.eq.s32.totalorder %s20, 7
      %p97 = por %p95, %p96
      %p99 = scmp.ne.s32.totalorder %s84, %s98
      %p100 = scmp.eq.s32.totalorder %s20, 0
      %p101 = por %p99, %p100
      %s103 = sadd.s32 %s102, 1
      %p106 = scmp.eq.s32.totalorder %s14, 7
      %p107 = scmp.ne.s32.totalorder %s102, %s104
      %p108 = scmp.eq.s32.totalorder %s14, 0
      %p109 = por %p107, %p108
      %p110 = scmp.ne.s32.totalorder %s102, %s104
      %p111 = scmp.eq.s32.totalorder %s19, 7
      %p112 = por %p110, %p111
      %p113 = scmp.ne.s32.totalorder %s104, %s105
      %p114 = scmp.eq.s32.totalorder %s19, 0
      %p115 = por %p113, %p114
      %p116 = scmp.ne.s32.totalorder %s104, %s105
      %p117 = scmp.eq.s32.totalorder %s20, 7
      %p118 = por %p116, %p117
      %p120 = scmp.ne.s32.totalorder %s105, %s119
      %p121 = scmp.eq.s32.totalorder %s20, 0
      %p122 = por %p120, %p121
      %s124 = sadd.s32 %s123, 1
      %p127 = scmp.eq.s32.totalorder %s14, 7
      %p128 = scmp.ne.s32.totalorder %s123, %s125
      %p129 = scmp.eq.s32.totalorder %s14, 0
      %p130 = por %p128, %p129
      %p131 = scmp.ne.s32.totalorder %s123, %s125
      %p132 = scmp.eq.s32.totalorder %s19, 7
      %p133 = por %p131, %p132
      %p134 = scmp.ne.s32.totalorder %s125, %s126
      %p135 = scmp.eq.s32.totalorder %s19, 0
      %p136 = por %p134, %p135
      %p137 = scmp.ne.s32.totalorder %s125, %s126
      %p138 = scmp.eq.s32.totalorder %s20, 7
      %p139 = por %p137, %p138
      %p141 = scmp.ne.s32.totalorder %s126, %s140
      %p142 = scmp.eq.s32.totalorder %s20, 0
      %p143 = por %p141, %p142
      %s144 = ssub.s32 %s21, %s33
      %p145 = scmp.eq.s32.totalorder %s144, 0
      %s147 = sadd.s32 %s146, 1
      %s148 = scalar_select %p145, %s146, %s147
      %p151 = pneg %p145
      %p152 = scmp.eq.s32.totalorder %s14, 7
      %p153 = por %p151, %p152
      %p154 = scmp.ne.s32.totalorder %s146, %s149
      %p155 = scmp.eq.s32.totalorder %s14, 0
      %p156 = por %p154, %p155
      %p157 = scmp.ne.s32.totalorder %s146, %s149
      %p158 = scmp.eq.s32.totalorder %s19, 7
      %p159 = por %p157, %p158
      %p160 = scmp.ne.s32.totalorder %s149, %s150
      %p161 = scmp.eq.s32.totalorder %s19, 0
      %p162 = por %p160, %p161
      %p163 = scmp.ne.s32.totalorder %s149, %s150
      %p164 = scmp.eq.s32.totalorder %s20, 7
      %p165 = por %p163, %p164
      %p167 = scmp.ne.s32.totalorder %s150, %s166
      %p168 = scmp.eq.s32.totalorder %s20, 0
      %p169 = por %p167, %p168
      %p170 = scmp.le.s32.totalorder 1, %s14
      %p171 = scmp.lt.s32.totalorder %s14, 9
      %p172 = pnand %p170, %p171
      %p173 = pneg %p172
      // Predicated region
      $region9: #{tpu_custom_call.1} parent=5 // pred_check
        _
      $region10: #{tpu_custom_call.1} parent=5 // pred_check_branch
        %175 = sbr.rel (%p172) target = $region12
      $region11: #{tpu_custom_call.1} parent=5 // pred_region
        %s176 = ssub.s32 %s14, 1
        // Predicated region
        $region13: #{tpu_custom_call.1} parent=11 // pred_check
          %p177 = pneg %p47
        $region14: #{tpu_custom_call.1} parent=11 // pred_check_branch
          %179 = sbr.rel (%p177) target = $region16
        $region15: #{tpu_custom_call.1} parent=11 // pred_region
          _
        $region16: #{tpu_custom_call.1} parent=11 // pred_fallthru
          _
        // Predicated region
        $region17: #{tpu_custom_call.1} parent=11 // pred_check
          %p180 = pneg %p94
        $region18: #{tpu_custom_call.1} parent=11 // pred_check_branch
          %182 = sbr.rel (%p180) target = $region20
        $region19: #{tpu_custom_call.1} parent=11 // pred_region
          _
        $region20: #{tpu_custom_call.1} parent=11 // pred_fallthru
          _
        // Predicated region
        $region21: #{tpu_custom_call.1} parent=11 // pred_check
          %p183 = pneg %p115
        $region22: #{tpu_custom_call.1} parent=11 // pred_check_branch
          %185 = sbr.rel (%p183) target = $region24
        $region23: #{tpu_custom_call.1} parent=11 // pred_region
          _
        $region24: #{tpu_custom_call.1} parent=11 // pred_fallthru
          _
        // Predicated region
        $region25: #{tpu_custom_call.1} parent=11 // pred_check
          %p186 = pneg %p136
        $region26: #{tpu_custom_call.1} parent=11 // pred_check_branch
          %188 = sbr.rel (%p186) target = $region28
        $region27: #{tpu_custom_call.1} parent=11 // pred_region
          _
        $region28: #{tpu_custom_call.1} parent=11 // pred_fallthru
          _
      $region12: #{tpu_custom_call.1} parent=5 // pred_fallthru
        _
      %p189 = scmp.lt.s32.totalorder %s14, 8
      // Predicated region
      $region29: #{tpu_custom_call.1} parent=5 // pred_check
        %p190 = pneg %p189
      $region30: #{tpu_custom_call.1} parent=5 // pred_check_branch
        %192 = sbr.rel (%p190) target = $region32
      $region31: #{tpu_custom_call.1} parent=5 // pred_region
        // Predicated region
        $region33: #{tpu_custom_call.1} parent=31 // pred_check
          %p193 = pneg %p67
        $region34: #{tpu_custom_call.1} parent=31 // pred_check_branch
          %195 = sbr.rel (%p193) target = $region36
        $region35: #{tpu_custom_call.1} parent=31 // pred_region
          %p196 = scmp.lt.s32.totalorder %s21, 1
          %s197 = scalar_select %p196, %s21, 1
          %s198 = smul.addr %s197, 3
          %s199 = smul.addr %s198, 4
          %s200 = scalar_lea.vmem %s1, %s199
        $region36: #{tpu_custom_call.1} parent=31 // pred_fallthru
          _
      $region32: #{tpu_custom_call.1} parent=5 // pred_fallthru
        _
      %p201 = scmp.le.s32.totalorder 1, %s14
      %p202 = scmp.lt.s32.totalorder %s14, 9
      %p203 = pnand %p201, %p202
      %p204 = pneg %p203
      // Predicated region
      $region37: #{tpu_custom_call.1} parent=5 // pred_check
        _
      $region38: #{tpu_custom_call.1} parent=5 // pred_check_branch
        %206 = sbr.rel (%p203) target = $region40
      $region39: #{tpu_custom_call.1} parent=5 // pred_region
        %s207 = ssub.s32 %s14, 1
        %p208 = pneg %p47
        %p209 = pneg %p44
        %p210 = scmp.lt.s32.totalorder %s23, 1
        %s211 = scalar_select %p210, %s23, 1
        %s212 = smul.addr %s211, 3
        %s213 = smul.addr %s212, 4
        %s214 = scalar_lea.vmem %s1, %s213
        %p215 = pneg %p73
        %p216 = pneg %p70
        %p217 = pneg %p94
        %p218 = pneg %p91
        %p219 = pneg %p115
        %p220 = pneg %p112
        %p221 = pneg %p136
        %p222 = pneg %p133
        %p223 = pneg %p162
        %p224 = pneg %p159
        %s225 = sand.u32 %s149, 1
        %s226 = scalar_lea.sflag [#allocation4], %s225
        %s227 = sand.u32 %s149, 1
        %s228 = smul.addr %s227, 24
        %s229 = scalar_lea.vmem [#allocation3], %s228
        %p230 = scmp.lt.s32.totalorder %s23, 1
        %s231 = scalar_select %p230, %s23, 1
        %s232 = smul.addr %s231, 3
        %s233 = smul.addr %s232, 4
        %s234 = scalar_lea.vmem %s1, %s233
        %s236 = smul.u32 %s24, 16
        %s237 = smul.addr %s236, 4
        %s238 = scalar_lea.vmem %s2, %s237
        %v239 = vld [vmem:[%s238] sm:$0xf]
        %v240 = vld [vmem:[%s238 + $0x4] sm:$0xf]
        %v241 = vld [vmem:[%s238 + $0x8] sm:$0xf]
        %v242 = vld [vmem:[%s238 + $0xc] sm:$0xf]
        %v243 = vld [vmem:[%s238 + $0x10] sm:$0xf]
        %v244 = vld [vmem:[%s238 + $0x14] sm:$0xf]
        %v245 = vld [vmem:[%s238 + $0x18] sm:$0xf]
        %v246 = vld [vmem:[%s238 + $0x1c] sm:$0xf]
        %v247 = vld [vmem:[%s238 + $0x20] sm:$0xf]
        %v248 = vld [vmem:[%s238 + $0x24] sm:$0xf]
        %v249 = vld [vmem:[%s238 + $0x28] sm:$0xf]
        %v250 = vld [vmem:[%s238 + $0x2c] sm:$0xf]
        %v251 = vld [vmem:[%s238 + $0x30] sm:$0xf]
        %v252 = vld [vmem:[%s238 + $0x34] sm:$0xf]
        %v253 = vld [vmem:[%s238 + $0x38] sm:$0xf]
        %v254 = vld [vmem:[%s238 + $0x3c] sm:$0xf]
        %s255 = smul.u32 %s24, 4
        %s256 = smul.addr %s255, 4
        %s257 = scalar_lea.vmem %s3, %s256
        %v258 = vld [vmem:[%s257] sm:$0xf]
        %v259 = vld [vmem:[%s257 + $0x4] sm:$0xf]
        %v260 = vld [vmem:[%s257 + $0x8] sm:$0xf]
        %v261 = vld [vmem:[%s257 + $0xc] sm:$0xf]
        %v262 = vld [vmem:[%s234] sm:$0xf]
        %v263 = vld [vmem:[%s234 + $0x4] sm:$0xf]
        %v264 = vld [vmem:[%s234 + $0x8] sm:$0xf]
        %v268 = vunpack.c.l.b16 %v262
        %v269 = vunpack.c.l.b16 %v263
        %v270 = vunpack.c.l.b16 %v264
        %v271 = vpack.c.b16 %v269, %v268
        %v272 = vpack.c.b16 %v270, %v270
        %v291 = vunpack.c.l.b16 %v239
        %v292 = vunpack.c.l.b16 %v240
        %v293 = vunpack.c.l.b16 %v241
        %v294 = vunpack.c.l.b16 %v242
        %v295 = vunpack.c.l.b16 %v243
        %v296 = vunpack.c.l.b16 %v244
        %v297 = vunpack.c.l.b16 %v245
        %v298 = vunpack.c.l.b16 %v246
        %v299 = vunpack.c.l.b16 %v247
        %v300 = vunpack.c.l.b16 %v248
        %v301 = vunpack.c.l.b16 %v249
        %v302 = vunpack.c.l.b16 %v250
        %v303 = vunpack.c.l.b16 %v251
        %v304 = vunpack.c.l.b16 %v252
        %v305 = vunpack.c.l.b16 %v253
        %v306 = vunpack.c.l.b16 %v254
        %v307 = vpack.c.b16 %v292, %v291
        %v308 = vpack.c.b16 %v294, %v293
        %v309 = vpack.c.b16 %v296, %v295
        %v310 = vpack.c.b16 %v298, %v297
        %v311 = vpack.c.b16 %v300, %v299
        %v312 = vpack.c.b16 %v302, %v301
        %v313 = vpack.c.b16 %v304, %v303
        %v314 = vpack.c.b16 %v306, %v305
        %323 = vmatprep.subr.bf16.mxu0 0
        %324 = vmatpush1.bf16.msra.mxu0 %v307
        %325 = vmatprep.subr.bf16.mxu0 0
        %326 = vmatpush1.bf16.msra.mxu0 %v308
        %327 = vmatprep.subr.bf16.mxu0 0
        %328 = vmatpush1.bf16.msra.mxu0 %v309
        %329 = vmatprep.subr.bf16.mxu0 0
        %330 = vmatpush1.bf16.msra.mxu0 %v310
        %331 = vmatprep.subr.bf16.mxu0 0
        %332 = vmatpush1.bf16.msra.mxu0 %v311
        %333 = vmatprep.subr.bf16.mxu0 0
        %334 = vmatpush1.bf16.msra.mxu0 %v312
        %335 = vmatprep.subr.bf16.mxu0 0
        %336 = vmatpush1.bf16.msra.mxu0 %v313
        %337 = vmatprep.subr.bf16.mxu0 0
        %338 = vmatpush1.bf16.msra.mxu0 %v314
        %339 = vmatprep.subr.bf16.mxu0 0
        %340 = vmatpush1.bf16.msra.mxu0 0
        %341 = vmatprep.subr.bf16.mxu0 0
        %342 = vmatpush1.bf16.msra.mxu0 0
        %343 = vmatprep.subr.bf16.mxu0 0
        %344 = vmatpush1.bf16.msra.mxu0 0
        %345 = vmatprep.subr.bf16.mxu0 0
        %346 = vmatpush1.bf16.msra.mxu0 0
        %347 = vmatprep.subr.bf16.mxu0 0
        %348 = vmatpush1.bf16.msra.mxu0 0
        %349 = vmatprep.subr.bf16.mxu0 0
        %350 = vmatpush1.bf16.msra.mxu0 0
        %351 = vmatprep.subr.bf16.mxu0 0
        %352 = vmatpush1.bf16.msra.mxu0 0
        %353 = vmatprep.subr.bf16.mxu0 0
        %354 = vmatpush1.bf16.msra.mxu0 0
        %355 = vmatprep.mubr.bf16.mxu0 0
        %356 = vmatmul.mubr.bf16.gmra.mrb[0].mxu0 %v271
        %v357 = vpop.f32.mrb[0].mxu0
        %v358 = vadd.f32 0.0, %v357
        %v359 = vpop.f32.mrb[0].mxu0
        %v360 = vpop.f32.mrb[0].mxu0
        %v361 = vadd.f32 0.0, %v360
        %v362 = vpop.f32.mrb[0].mxu0
        %363 = vmatprep.mubr.bf16.mxu0 0
        %364 = vmatmul.mubr.bf16.gmra.mrb[0].mxu0 %v272
        %v365 = vpop.f32.mrb[0].mxu0
        %v366 = vadd.f32 0.0, %v365
        %v367 = vpop.f32.mrb[0].mxu0
        %v368 = vpop.f32.mrb[0].mxu0
        %v369 = vpop.f32.mrb[0].mxu0
        %370 = vdwg.mxu0
        %v371 = vmul.f32 %v361, 0.17677669
        %v372 = vmul.f32 %v366, 0.17677669
        %v373 = vpack.c.bf16 %v372, %v371
        %v374 = vpack.c.bf16 %v361, %v358
        %v375 = vpack.c.bf16 %v366, %v366
        %v376 = vld [vmem:[%s0] sm:$0xf]
        %377 = vmatprep.subr.bf16.mxu0 0
        %378 = vmatpush1.bf16.msra.mxu0 %v307
        %379 = vmatprep.subr.bf16.mxu0 0
        %380 = vmatpush1.bf16.msra.mxu0 %v308
        %381 = vmatprep.subr.bf16.mxu0 0
        %382 = vmatpush1.bf16.msra.mxu0 %v309
        %383 = vmatprep.subr.bf16.mxu0 0
        %384 = vmatpush1.bf16.msra.mxu0 %v310
        %385 = vmatprep.subr.bf16.mxu0 0
        %386 = vmatpush1.bf16.msra.mxu0 %v311
        %387 = vmatprep.subr.bf16.mxu0 0
        %388 = vmatpush1.bf16.msra.mxu0 %v312
        %389 = vmatprep.subr.bf16.mxu0 0
        %390 = vmatpush1.bf16.msra.mxu0 %v313
        %391 = vmatprep.subr.bf16.mxu0 0
        %392 = vmatpush1.bf16.msra.mxu0 %v314
        %393 = vmatprep.subr.bf16.mxu0 0
        %394 = vmatpush1.bf16.msra.mxu0 0
        %395 = vmatprep.subr.bf16.mxu0 0
        %396 = vmatpush1.bf16.msra.mxu0 0
        %397 = vmatprep.subr.bf16.mxu0 0
        %398 = vmatpush1.bf16.msra.mxu0 0
        %399 = vmatprep.subr.bf16.mxu0 0
        %400 = vmatpush1.bf16.msra.mxu0 0
        %401 = vmatprep.subr.bf16.mxu0 0
        %402 = vmatpush1.bf16.msra.mxu0 0
        %403 = vmatprep.subr.bf16.mxu0 0
        %404 = vmatpush1.bf16.msra.mxu0 0
        %405 = vmatprep.subr.bf16.mxu0 0
        %406 = vmatpush1.bf16.msra.mxu0 0
        %407 = vmatprep.subr.bf16.mxu0 0
        %408 = vmatpush1.bf16.msra.mxu0 0
        %409 = vmatprep.mubr.bf16.mxu0 0
        %410 = vmatmul.mubr.bf16.gmra.mrb[0].mxu0 %v376
        %v411 = vpop.f32.mrb[0].mxu0
        %v412 = vadd.f32 0.0, %v411
        %v413 = vpop.f32.mrb[0].mxu0
        %v414 = vpop.f32.mrb[0].mxu0
        %v415 = vpop.f32.mrb[0].mxu0
        %416 = vdwg.mxu0
        %v417 = vmul.f32 %v412, 0.17677669
        %v418 = vpack.c.bf16 %v417, %v417
        %v419 = vpack.c.bf16 %v412, %v412
        %421 = vrot.lane.b32.xlu0 %v419, 96
        %v422 = vpop.permute.xlu0 %421
        %vm423 = vcmask 261120
        %v425 = vsel %vm423, %v418, 0
        %v428 = vsel %vm423, %v422, 0
        %430 = vmatprep.subr.bf16.mxu0 0
        %431 = vmatpush1.bf16.xpose.msra.mxu0 %v428
        %432 = vmatprep.subr.bf16.mxu0 0
        %433 = vmatpush1.bf16.xpose.msra.mxu0 0
        %434 = vmatprep.subr.bf16.mxu0 0
        %435 = vmatpush1.bf16.xpose.msra.mxu0 0
        %436 = vmatprep.subr.bf16.mxu0 0
        %437 = vmatpush1.bf16.xpose.msra.mxu0 0
        %438 = vmatprep.subr.bf16.mxu0 0
        %439 = vmatpush1.bf16.xpose.msra.mxu0 0
        %440 = vmatprep.subr.bf16.mxu0 0
        %441 = vmatpush1.bf16.xpose.msra.mxu0 0
        %442 = vmatprep.subr.bf16.mxu0 0
        %443 = vmatpush1.bf16.xpose.msra.mxu0 0
        %444 = vmatprep.subr.bf16.mxu0 0
        %445 = vmatpush1.bf16.xpose.msra.mxu0 0
        %446 = vmatprep.subr.bf16.mxu0 0
        %447 = vmatpush1.bf16.xpose.msra.mxu0 0
        %448 = vmatprep.subr.bf16.mxu0 0
        %449 = vmatpush1.bf16.xpose.msra.mxu0 0
        %450 = vmatprep.subr.bf16.mxu0 0
        %451 = vmatpush1.bf16.xpose.msra.mxu0 0
        %452 = vmatprep.subr.bf16.mxu0 0
        %453 = vmatpush1.bf16.xpose.msra.mxu0 0
        %454 = vmatprep.subr.bf16.mxu0 0
        %455 = vmatpush1.bf16.xpose.msra.mxu0 0
        %456 = vmatprep.subr.bf16.mxu0 0
        %457 = vmatpush1.bf16.xpose.msra.mxu0 0
        %458 = vmatprep.subr.bf16.mxu0 0
        %459 = vmatpush1.bf16.xpose.msra.mxu0 0
        %460 = vmatprep.subr.bf16.mxu0 0
        %461 = vmatpush1.bf16.xpose.msra.mxu0 0
        %462 = vmatprep.mubr.bf16.mxu0 0
        %463 = vmatmul.mubr.bf16.gmra.mrb[0].mxu0 %v425
        %v464 = vpop.f32.mrb[0].mxu0
        %v465 = vadd.f32 0.0, %v464
        %v466 = vpop.f32.mrb[0].mxu0
        %v467 = vpop.f32.mrb[0].mxu0
        %v468 = vpop.f32.mrb[0].mxu0
        %469 = vdwg.mxu0
        %vm470 = vcmask 64512
        %v471 = vsel %vm470, %v465, -inf
        %472 = vmax.xlane.f32.xlu0 %v471
        %v473 = vpop.xlane.xlu0 %472
        %v474 = vsub.f32 %v465, %v473
        %v475 = vmul.f32 %v474, 1.442695
        %v476 = vpow.pop %v475
        %v477 = vsel %vm470, %v476, 0.0
        %478 = vadd.xlane.f32.xlu0 %v477
        %v479 = vpop.xlane.xlu0 %478
        %v480 = vrcp.pop %v479
        %v481 = vmul.f32 %v476, %v480
        %v482 = vpack.c.bf16 %v481, %v481
        %483 = vrot.lane.b32.xlu0 %v419, 64
        %v484 = vpop.permute.xlu0 %483
        %v486 = vsel %vm470, %v482, 0
        %vm488 = vcmask 1043456
        %v490 = vsel %vm488, %v484, 0
        %492 = vmatprep.subr.bf16.mxu0 0
        %493 = vmatpush1.bf16.msra.mxu0 %v490
        %494 = vmatprep.subr.bf16.mxu0 0
        %495 = vmatpush1.bf16.msra.mxu0 0
        %496 = vmatprep.subr.bf16.mxu0 0
        %497 = vmatpush1.bf16.msra.mxu0 0
        %498 = vmatprep.subr.bf16.mxu0 0
        %499 = vmatpush1.bf16.msra.mxu0 0
        %500 = vmatprep.subr.bf16.mxu0 0
        %501 = vmatpush1.bf16.msra.mxu0 0
        %502 = vmatprep.subr.bf16.mxu0 0
        %503 = vmatpush1.bf16.msra.mxu0 0
        %504 = vmatprep.subr.bf16.mxu0 0
        %505 = vmatpush1.bf16.msra.mxu0 0
        %506 = vmatprep.subr.bf16.mxu0 0
        %507 = vmatpush1.bf16.msra.mxu0 0
        %508 = vmatprep.subr.bf16.mxu0 0
        %509 = vmatpush1.bf16.msra.mxu0 0
        %510 = vmatprep.subr.bf16.mxu0 0
        %511 = vmatpush1.bf16.msra.mxu0 0
        %512 = vmatprep.subr.bf16.mxu0 0
        %513 = vmatpush1.bf16.msra.mxu0 0
        %514 = vmatprep.subr.bf16.mxu0 0
        %515 = vmatpush1.bf16.msra.mxu0 0
        %516 = vmatprep.subr.bf16.mxu0 0
        %517 = vmatpush1.bf16.msra.mxu0 0
        %518 = vmatprep.subr.bf16.mxu0 0
        %519 = vmatpush1.bf16.msra.mxu0 0
        %520 = vmatprep.subr.bf16.mxu0 0
        %521 = vmatpush1.bf16.msra.mxu0 0
        %522 = vmatprep.subr.bf16.mxu0 0
        %523 = vmatpush1.bf16.msra.mxu0 0
        %524 = vmatprep.mubr.bf16.mxu0 0
        %525 = vmatmul.mubr.bf16.gmra.mrb[0].mxu0 %v486
        %v526 = vpop.f32.mrb[0].mxu0
        %v527 = vadd.f32 0.0, %v526
        %v528 = vpop.f32.mrb[0].mxu0
        %v529 = vpop.f32.mrb[0].mxu0
        %v530 = vpop.f32.mrb[0].mxu0
        %531 = vdwg.mxu0
        %534 = vrot.lane.b32.xlu0 %v374, 96
        %v535 = vpop.permute.xlu0 %534
        %536 = vrot.lane.b32.xlu0 %v375, 96
        %v537 = vpop.permute.xlu0 %536
        %v539 = vsel %vm423, %v373, 0
        %v542 = vsel %vm423, %v535, 0
        %v545 = vsel %vm423, %v537, 0
        %547 = vmatprep.subr.bf16.mxu0 0
        %548 = vmatpush1.bf16.xpose.msra.mxu0 %v542
        %549 = vmatprep.subr.bf16.mxu0 0
        %550 = vmatpush1.bf16.xpose.msra.mxu0 %v545
        %551 = vmatprep.subr.bf16.mxu0 0
        %552 = vmatpush1.bf16.xpose.msra.mxu0 0
        %553 = vmatprep.subr.bf16.mxu0 0
        %554 = vmatpush1.bf16.xpose.msra.mxu0 0
        %555 = vmatprep.subr.bf16.mxu0 0
        %556 = vmatpush1.bf16.xpose.msra.mxu0 0
        %557 = vmatprep.subr.bf16.mxu0 0
        %558 = vmatpush1.bf16.xpose.msra.mxu0 0
        %559 = vmatprep.subr.bf16.mxu0 0
        %560 = vmatpush1.bf16.xpose.msra.mxu0 0
        %561 = vmatprep.subr.bf16.mxu0 0
        %562 = vmatpush1.bf16.xpose.msra.mxu0 0
        %563 = vmatprep.subr.bf16.mxu0 0
        %564 = vmatpush1.bf16.xpose.msra.mxu0 0
        %565 = vmatprep.subr.bf16.mxu0 0
        %566 = vmatpush1.bf16.xpose.msra.mxu0 0
        %567 = vmatprep.subr.bf16.mxu0 0
        %568 = vmatpush1.bf16.xpose.msra.mxu0 0
        %569 = vmatprep.subr.bf16.mxu0 0
        %570 = vmatpush1.bf16.xpose.msra.mxu0 0
        %571 = vmatprep.subr.bf16.mxu0 0
        %572 = vmatpush1.bf16.xpose.msra.mxu0 0
        %573 = vmatprep.subr.bf16.mxu0 0
        %574 = vmatpush1.bf16.xpose.msra.mxu0 0
        %575 = vmatprep.subr.bf16.mxu0 0
        %576 = vmatpush1.bf16.xpose.msra.mxu0 0
        %577 = vmatprep.subr.bf16.mxu0 0
        %578 = vmatpush1.bf16.xpose.msra.mxu0 0
        %579 = vmatprep.mubr.bf16.mxu0 0
        %580 = vmatmul.mubr.bf16.gmra.mrb[0].mxu0 %v539
        %v581 = vpop.f32.mrb[0].mxu0
        %v582 = vadd.f32 0.0, %v581
        %v583 = vpop.f32.mrb[0].mxu0
        %v584 = vpop.f32.mrb[0].mxu0
        %v585 = vadd.f32 0.0, %v584
        %v586 = vpop.f32.mrb[0].mxu0
        %587 = vdwg.mxu0
        %vm588 = vcmask 195584
        %v589 = vsel %vm588, %v582, -inf
        %590 = vmax.xlane.f32.xlu0 %v589
        %v591 = vpop.xlane.xlu0 %590
        %v592 = vsel %vm588, %v585, -inf
        %593 = vmax.xlane.f32.xlu0 %v592
        %v594 = vpop.xlane.xlu0 %593
        %v595 = vsub.f32 %v582, %v591
        %v596 = vsub.f32 %v585, %v594
        %v597 = vmul.f32 %v595, 1.442695
        %v598 = vpow.pop %v597
        %v599 = vmul.f32 %v596, 1.442695
        %v600 = vpow.pop %v599
        %v601 = vsel %vm588, %v598, 0.0
        %602 = vadd.xlane.f32.xlu0 %v601
        %v603 = vpop.xlane.xlu0 %602
        %v604 = vsel %vm588, %v600, 0.0
        %605 = vadd.xlane.f32.xlu0 %v604
        %v606 = vpop.xlane.xlu0 %605
        %v607 = vrcp.pop %v603
        %v608 = vrcp.pop %v606
        %v609 = vmul.f32 %v598, %v607
        %v610 = vmul.f32 %v600, %v608
        %v611 = vpack.c.bf16 %v610, %v609
        %612 = vrot.lane.b32.xlu0 %v374, 64
        %v613 = vpop.permute.xlu0 %612
        %614 = vrot.lane.b32.xlu0 %v375, 64
        %v615 = vpop.permute.xlu0 %614
        %v618 = vsel %vm588, %v611, 0
        %v621 = vsel %vm488, %v615, 0
        %623 = vmatprep.subr.bf16.mxu0 0
        %624 = vmatpush1.bf16.msra.mxu0 %v613
        %625 = vmatprep.subr.bf16.mxu0 0
        %626 = vmatpush1.bf16.msra.mxu0 %v621
        %627 = vmatprep.subr.bf16.mxu0 0
        %628 = vmatpush1.bf16.msra.mxu0 0
        %629 = vmatprep.subr.bf16.mxu0 0
        %630 = vmatpush1.bf16.msra.mxu0 0
        %631 = vmatprep.subr.bf16.mxu0 0
        %632 = vmatpush1.bf16.msra.mxu0 0
        %633 = vmatprep.subr.bf16.mxu0 0
        %634 = vmatpush1.bf16.msra.mxu0 0
        %635 = vmatprep.subr.bf16.mxu0 0
        %636 = vmatpush1.bf16.msra.mxu0 0
        %637 = vmatprep.subr.bf16.mxu0 0
        %638 = vmatpush1.bf16.msra.mxu0 0
        %639 = vmatprep.subr.bf16.mxu0 0
        %640 = vmatpush1.bf16.msra.mxu0 0
        %641 = vmatprep.subr.bf16.mxu0 0
        %642 = vmatpush1.bf16.msra.mxu0 0
        %643 = vmatprep.subr.bf16.mxu0 0
        %644 = vmatpush1.bf16.msra.mxu0 0
        %645 = vmatprep.subr.bf16.mxu0 0
        %646 = vmatpush1.bf16.msra.mxu0 0
        %647 = vmatprep.subr.bf16.mxu0 0
        %648 = vmatpush1.bf16.msra.mxu0 0
        %649 = vmatprep.subr.bf16.mxu0 0
        %650 = vmatpush1.bf16.msra.mxu0 0
        %651 = vmatprep.subr.bf16.mxu0 0
        %652 = vmatpush1.bf16.msra.mxu0 0
        %653 = vmatprep.subr.bf16.mxu0 0
        %654 = vmatpush1.bf16.msra.mxu0 0
        %655 = vmatprep.mubr.bf16.mxu0 0
        %656 = vmatmul.mubr.bf16.gmra.mrb[0].mxu0 %v618
        %v657 = vpop.f32.mrb[0].mxu0
        %v658 = vadd.f32 0.0, %v657
        %v659 = vpop.f32.mrb[0].mxu0
        %v660 = vpop.f32.mrb[0].mxu0
        %v661 = vadd.f32 0.0, %v660
        %v662 = vpop.f32.mrb[0].mxu0
        %663 = vdwg.mxu0
        %v664 = vpack.c.bf16 %v527, %v527
        %v669 = vunpack.c.l.b16 %v258
        %v670 = vunpack.c.l.b16 %v259
        %v671 = vunpack.c.l.b16 %v260
        %v672 = vunpack.c.l.b16 %v261
        %v673 = vpack.c.b16 %v670, %v669
        %v674 = vpack.c.b16 %v672, %v671
        %v678 = vsel %vm423, %v664, 0
        %680 = vmatprep.subr.bf16.mxu0 0
        %681 = vmatpush1.bf16.msra.mxu0 %v673
        %682 = vmatprep.subr.bf16.mxu0 0
        %683 = vmatpush1.bf16.msra.mxu0 %v674
        %684 = vmatprep.subr.bf16.mxu0 0
        %685 = vmatpush1.bf16.msra.mxu0 0
        %686 = vmatprep.subr.bf16.mxu0 0
        %687 = vmatpush1.bf16.msra.mxu0 0
        %688 = vmatprep.subr.bf16.mxu0 0
        %689 = vmatpush1.bf16.msra.mxu0 0
        %690 = vmatprep.subr.bf16.mxu0 0
        %691 = vmatpush1.bf16.msra.mxu0 0
        %692 = vmatprep.subr.bf16.mxu0 0
        %693 = vmatpush1.bf16.msra.mxu0 0
        %694 = vmatprep.subr.bf16.mxu0 0
        %695 = vmatpush1.bf16.msra.mxu0 0
        %696 = vmatprep.subr.bf16.mxu0 0
        %697 = vmatpush1.bf16.msra.mxu0 0
        %698 = vmatprep.subr.bf16.mxu0 0
        %699 = vmatpush1.bf16.msra.mxu0 0
        %700 = vmatprep.subr.bf16.mxu0 0
        %701 = vmatpush1.bf16.msra.mxu0 0
        %702 = vmatprep.subr.bf16.mxu0 0
        %703 = vmatpush1.bf16.msra.mxu0 0
        %704 = vmatprep.subr.bf16.mxu0 0
        %705 = vmatpush1.bf16.msra.mxu0 0
        %706 = vmatprep.subr.bf16.mxu0 0
        %707 = vmatpush1.bf16.msra.mxu0 0
        %708 = vmatprep.subr.bf16.mxu0 0
        %709 = vmatpush1.bf16.msra.mxu0 0
        %710 = vmatprep.subr.bf16.mxu0 0
        %711 = vmatpush1.bf16.msra.mxu0 0
        %712 = vmatprep.mubr.bf16.mxu0 0
        %713 = vmatmul.mubr.bf16.gmra.mrb[0].mxu0 %v678
        %v714 = vpop.f32.mrb[0].mxu0
        %v715 = vadd.f32 0.0, %v714
        %v716 = vpop.f32.mrb[0].mxu0
        %v717 = vpop.f32.mrb[0].mxu0
        %v718 = vpop.f32.mrb[0].mxu0
        %719 = vdwg.mxu0
        %v720 = vpack.c.bf16 %v661, %v658
        %v722 = vsel %vm423, %v720, 0
        %724 = vmatprep.subr.bf16.mxu0 0
        %725 = vmatpush1.bf16.msra.mxu0 %v673
        %726 = vmatprep.subr.bf16.mxu0 0
        %727 = vmatpush1.bf16.msra.mxu0 %v674
        %728 = vmatprep.subr.bf16.mxu0 0
        %729 = vmatpush1.bf16.msra.mxu0 0
        %730 = vmatprep.subr.bf16.mxu0 0
        %731 = vmatpush1.bf16.msra.mxu0 0
        %732 = vmatprep.subr.bf16.mxu0 0
        %733 = vmatpush1.bf16.msra.mxu0 0
        %734 = vmatprep.subr.bf16.mxu0 0
        %735 = vmatpush1.bf16.msra.mxu0 0
        %736 = vmatprep.subr.bf16.mxu0 0
        %737 = vmatpush1.bf16.msra.mxu0 0
        %738 = vmatprep.subr.bf16.mxu0 0
        %739 = vmatpush1.bf16.msra.mxu0 0
        %740 = vmatprep.subr.bf16.mxu0 0
        %741 = vmatpush1.bf16.msra.mxu0 0
        %742 = vmatprep.subr.bf16.mxu0 0
        %743 = vmatpush1.bf16.msra.mxu0 0
        %744 = vmatprep.subr.bf16.mxu0 0
        %745 = vmatpush1.bf16.msra.mxu0 0
        %746 = vmatprep.subr.bf16.mxu0 0
        %747 = vmatpush1.bf16.msra.mxu0 0
        %748 = vmatprep.subr.bf16.mxu0 0
        %749 = vmatpush1.bf16.msra.mxu0 0
        %750 = vmatprep.subr.bf16.mxu0 0
        %751 = vmatpush1.bf16.msra.mxu0 0
        %752 = vmatprep.subr.bf16.mxu0 0
        %753 = vmatpush1.bf16.msra.mxu0 0
        %754 = vmatprep.subr.bf16.mxu0 0
        %755 = vmatpush1.bf16.msra.mxu0 0
        %756 = vmatprep.mubr.bf16.mxu0 0
        %757 = vmatmul.mubr.bf16.gmra.mrb[0].mxu0 %v722
        %v758 = vpop.f32.mrb[0].mxu0
        %v759 = vadd.f32 0.0, %v758
        %v760 = vpop.f32.mrb[0].mxu0
        %v761 = vpop.f32.mrb[0].mxu0
        %v762 = vadd.f32 0.0, %v761
        %v763 = vpop.f32.mrb[0].mxu0
        %764 = vdwg.mxu0
        %p765 = scmp.eq.s32.totalorder %s24, 0
        // Predicated region
        $region41: #{tpu_custom_call.1} parent=39 // pred_check
          %p766 = pneg %p765
        $region42: #{tpu_custom_call.1} parent=39 // pred_check_branch
          %768 = sbr.rel (%p766) target = $region44
        $region43: #{tpu_custom_call.1} parent=39 // pred_region
          %769 = vst [vmem:[#allocation2] sm:$0xff] 0.0
          %770 = vst [vmem:[#allocation2 + $0x8] sm:$0xff] 0.0
          %771 = vst [vmem:[#allocation2 + $0x10] sm:$0xff] 0.0
        $region44: #{tpu_custom_call.1} parent=39 // pred_fallthru
          _
        %v772 = vld [vmem:[#allocation2] sm:$0xff]
        %v773 = vadd.f32 %v772, %v715
        %774 = vst [vmem:[#allocation2] sm:$0xff] %v773
        %v775 = vld [vmem:[#allocation2 + $0x8] sm:$0xff]
        %v776 = vld [vmem:[#allocation2 + $0x10] sm:$0xff]
        %v777 = vadd.f32 %v775, %v759
        %v778 = vadd.f32 %v776, %v762
        %779 = vst [vmem:[#allocation2 + $0x8] sm:$0xff] %v777
        %780 = vst [vmem:[#allocation2 + $0x10] sm:$0xff] %v778
        %p781 = scmp.eq.s32.totalorder %s24, 3
        // Predicated region
        $region45: #{tpu_custom_call.1} parent=39 // pred_check
          %p782 = pneg %p781
        $region46: #{tpu_custom_call.1} parent=39 // pred_check_branch
          %784 = sbr.rel (%p782) target = $region48
        $region47: #{tpu_custom_call.1} parent=39 // pred_region
          %v785 = vld [vmem:[#allocation2] sm:$0xff]
          %v786 = vld [vmem:[#allocation2 + $0x8] sm:$0xff]
          %v787 = vld [vmem:[#allocation2 + $0x10] sm:$0xff]
          %v788 = vld [vmem:[%s4] sm:$0x1]
          %v790 = vlaneseq
          %v791 = vshrl.u32 %v790, 7
          %v792 = vsub.s32 0, %v791
          %v793 = vrot.slane %v788, %v792
          %v795 = vadd.f32 %v785, %v793
          %v796 = vadd.f32 %v786, %v793
          %v797 = vadd.f32 %v787, %v793
          %798 = vst [vmem:[%s229] sm:$0xff] %v795
          %799 = vst [vmem:[%s229 + $0x8] sm:$0xff] %v796
          %800 = vst [vmem:[%s229 + $0x10] sm:$0xff] %v797
        $region48: #{tpu_custom_call.1} parent=39 // pred_fallthru
          _
        %s801 = sand.u32 %s149, 1
        %s802 = scalar_lea.sflag [#allocation4], %s801
        %s803 = sand.u32 %s149, 1
        %s804 = smul.addr %s803, 24
        %s805 = scalar_lea.vmem [#allocation3], %s804
        // Predicated region
        $region49: #{tpu_custom_call.1} parent=39 // pred_check
          %p806 = pneg %p159
        $region50: #{tpu_custom_call.1} parent=39 // pred_check_branch
          %808 = sbr.rel (%p806) target = $region52
        $region51: #{tpu_custom_call.1} parent=39 // pred_region
          %s810 = ssub.s32 384, 384
          %811 = vsyncadd %s802, %s810
          %s812 = smul.addr %s23, 3
          %s813 = smul.addr %s812, 128
          %s814 = scalar_lea.hbm %s5, %s813
          %s815 = sshll.u32 %s805, 4
          %s816 = int_to_ptr.vmem [resolvable:$true] %s815
          %821 = dma.vmem_to_hbm [thread:$0]  %s816, 384, %s814, %s802, 128, 128, 8
        $region52: #{tpu_custom_call.1} parent=39 // pred_fallthru
          _
      $region40: #{tpu_custom_call.1} parent=5 // pred_fallthru
        _
      %p822 = scmp.le.s32.totalorder 2, %s14
      // Predicated region
      $region53: #{tpu_custom_call.1} parent=5 // pred_check
        %p823 = pneg %p822
      $region54: #{tpu_custom_call.1} parent=5 // pred_check_branch
        %825 = sbr.rel (%p823) target = $region56
      $region55: #{tpu_custom_call.1} parent=5 // pred_region
        %s826 = ssub.s32 %s14, 2
        // Predicated region
        $region57: #{tpu_custom_call.1} parent=55 // pred_check
          %p827 = pneg %p165
        $region58: #{tpu_custom_call.1} parent=55 // pred_check_branch
          %829 = sbr.rel (%p827) target = $region60
        $region59: #{tpu_custom_call.1} parent=55 // pred_region
          %s830 = sand.u32 %s150, 1
          %s831 = scalar_lea.sflag [#allocation4], %s830
          %s832 = sand.u32 %s150, 1
          %s833 = smul.addr %s832, 24
          %s834 = scalar_lea.vmem [#allocation3], %s833
          %835 = dma.done %s831, 384
        $region60: #{tpu_custom_call.1} parent=55 // pred_fallthru
          _
      $region56: #{tpu_custom_call.1} parent=5 // pred_fallthru
        _
    $region6: #{tpu_custom_call.1} parent=1 // loop_footer
      %s18 = sadd.s32 1, %s14
    $region7: #{tpu_custom_call.1} parent=1 // loop_footer_branch
      %13 = sbr.rel target = $region3
    $region8: #{tpu_custom_call.1} parent=1 // loop_exit
      _
    %836 = vsyncpa [#allocation4], 1
    %s837 = scalar_lea.sflag [#allocation4], 1
    %838 = vsyncpa %s837, 1

</llo_original>
